<compile_context>
chip_gen: v7x
topology: tpu7x:2x2x1
jax: 0.10.0
libtpu: 0.0.40
codegen_flags: <defaults>
</compile_context>

<pallas_src>
import functools
import math

import jax
import jax.numpy as jnp
from jax import lax
from jax.experimental import pallas as pl
from jax.experimental.pallas import tpu as pltpu


def _round_up(n, m):
    return ((n + m - 1) // m) * m


def _softmax(x, axis):
    m = jnp.max(x, axis=axis, keepdims=True)
    e = jnp.exp(x - m)
    return e / jnp.sum(e, axis=axis, keepdims=True)


def _layer_norm(x, gamma, beta, eps=1e-5):
    mu = jnp.mean(x, axis=-1, keepdims=True)
    var = jnp.mean(jnp.square(x - mu), axis=-1, keepdims=True)
    return (x - mu) * lax.rsqrt(var + eps) * gamma + beta


# ---------------------------------------------------------------------------
# Kernel 1: WordEmbeddingLayer gather * sqrt(E) + PositionalEmbeddingLayer add
# ---------------------------------------------------------------------------
def _embed_pos_kernel(idx_ref, w_ref, pos_ref, o_ref, *, scale):
    # idx_ref: (B*S_pad,) int32 in SMEM (scalar prefetch)
    # w_ref:   (V, E) embedding table, VMEM resident
    # pos_ref: (S_pad, E) positional table, VMEM resident
    # o_ref:   (S_pad, E) output tile for batch b
    b = pl.program_id(0)
    s_pad = o_ref.shape[0]
    base = b * s_pad

    def body(t, carry):
        tok = idx_ref[base + t]                      # scalar SMEM read
        o_ref[pl.ds(t, 1), :] = (w_ref[pl.ds(tok, 1), :] * scale
                                 + pos_ref[pl.ds(t, 1), :])
        return carry

    lax.fori_loop(0, s_pad, body, 0, unroll=True)


# ---------------------------------------------------------------------------
# Kernel 2: one nn.TransformerEncoderLayer (post-norm, ReLU, eval mode)
# ---------------------------------------------------------------------------
def _encoder_layer_kernel(x_ref, kmask_ref, wqkv_ref, bqkv_ref, wo_ref, bo_ref,
                          g1_ref, be1_ref, w1_ref, b1_ref, w2_ref, b2_ref,
                          g2_ref, be2_ref, o_ref, *, num_heads):
    x = x_ref[...]                                           # (S, E) f32
    e = x.shape[-1]
    dh = e // num_heads
    keep = kmask_ref[...]                                    # (1, S); 1.0 = real token

    qkv = jnp.dot(x, wqkv_ref[...], preferred_element_type=jnp.float32) + bqkv_ref[...]
    q, k, v = qkv[:, :e], qkv[:, e:2 * e], qkv[:, 2 * e:]

    inv_sqrt_dh = 1.0 / math.sqrt(dh)
    ctx_parts = []
    for h in range(num_heads):
        lo, hi = h * dh, (h + 1) * dh
        qh = q[:, lo:hi] * inv_sqrt_dh
        kh = k[:, lo:hi]
        vh = v[:, lo:hi]
        s = lax.dot_general(qh, kh, (((1,), (1,)), ((), ())),
                            preferred_element_type=jnp.float32)        # (S, S)
        s = jnp.where(keep > 0.0, s, -1e9)                   # src_key_padding_mask
        p = _softmax(s, axis=-1)
        ctx_parts.append(jnp.dot(p, vh, preferred_element_type=jnp.float32))
    ctx = jnp.concatenate(ctx_parts, axis=-1)                # (S, E)

    attn_out = jnp.dot(ctx, wo_ref[...], preferred_element_type=jnp.float32) + bo_ref[...]
    x = _layer_norm(x + attn_out, g1_ref[...], be1_ref[...])

    hmid = jnp.maximum(
        jnp.dot(x, w1_ref[...], preferred_element_type=jnp.float32) + b1_ref[...], 0.0)
    ff = jnp.dot(hmid, w2_ref[...], preferred_element_type=jnp.float32) + b2_ref[...]
    x = _layer_norm(x + ff, g2_ref[...], be2_ref[...])

    o_ref[...] = x


# ---------------------------------------------------------------------------
# Kernel 3: LabelAttentionLayer + final ff_layer reduction -> (1, C) logits row
# ---------------------------------------------------------------------------
def _label_attn_classifier_kernel(x_ref, amask_ref, w1_ref, b1_ref, w2_ref, b2_ref,
                                  ffw_ref, ffb_ref, o_ref):
    b = pl.program_id(0)
    h = x_ref[...]                                           # (S, E)
    keep = amask_ref[...]                                    # (S, 1); 1.0 = real token

    a1 = jnp.tanh(jnp.dot(h, w1_ref[...], preferred_element_type=jnp.float32) + b1_ref[...])
    o2 = jnp.dot(a1, w2_ref[...], preferred_element_type=jnp.float32) + b2_ref[...]   # (S, C)
    o2 = jnp.where(keep > 0.0, o2, -1e9)                     # masked_fill(attn_mask == 0)
    p = _softmax(o2, axis=0)                                 # softmax over sequence dim

    # outputs[c] = sum_s p[s, c] * (h @ ffW^T)[s, c] + ff_b[c]
    #            == ((softmax(o2).T @ h) * ffW).sum(-1) + ff_b   (no (C, E) intermediate)
    m = jnp.dot(h, ffw_ref[...], preferred_element_type=jnp.float32)  # (S, C)
    row = jnp.sum(p * m, axis=0, keepdims=True) + ffb_ref[...]        # (1, C)
    o_ref[pl.ds(b, 1), :] = row


# ---------------------------------------------------------------------------
# pallas_call wrappers
# ---------------------------------------------------------------------------
def _embed_positional(ids_flat, embed_w, pos_emb, batch, s_pad):
    v, e = embed_w.shape
    scale = math.sqrt(e)
    return pl.pallas_call(
        functools.partial(_embed_pos_kernel, scale=scale),
        out_shape=jax.ShapeDtypeStruct((batch, s_pad, e), jnp.float32),
        grid_spec=pltpu.PrefetchScalarGridSpec(
            num_scalar_prefetch=1,
            grid=(batch,),
            in_specs=[
                pl.BlockSpec((v, e), lambda b, idx: (0, 0)),       # embedding table
                pl.BlockSpec((s_pad, e), lambda b, idx: (0, 0)),   # positional table
            ],
            out_specs=pl.BlockSpec((None, s_pad, e), lambda b, idx: (b, 0, 0)),
        ),
        compiler_params=pltpu.CompilerParams(dimension_semantics=("parallel",)),
    )(ids_flat, embed_w, pos_emb)


def _encoder_layer(x, kmask, layer, *, num_heads):
    batch, s_pad, e = x.shape
    f = layer["w1_t"].shape[1]
    const = lambda b: (0, 0)
    return pl.pallas_call(
        functools.partial(_encoder_layer_kernel, num_heads=num_heads),
        out_shape=jax.ShapeDtypeStruct((batch, s_pad, e), jnp.float32),
        grid_spec=pltpu.PrefetchScalarGridSpec(
            num_scalar_prefetch=0,
            grid=(batch,),
            in_specs=[
                pl.BlockSpec((None, s_pad, e), lambda b: (b, 0, 0)),   # x
                pl.BlockSpec((None, 1, s_pad), lambda b: (b, 0, 0)),   # key-padding mask
                pl.BlockSpec((e, 3 * e), const),                       # wqkv_t
                pl.BlockSpec((1, 3 * e), const),                       # bqkv
                pl.BlockSpec((e, e), const),                           # wo_t
                pl.BlockSpec((1, e), const),                           # bo
                pl.BlockSpec((1, e), const),                           # ln1 gamma
                pl.BlockSpec((1, e), const),                           # ln1 beta
                pl.BlockSpec((e, f), const),                           # w1_t
                pl.BlockSpec((1, f), const),                           # b1
                pl.BlockSpec((f, e), const),                           # w2_t
                pl.BlockSpec((1, e), const),                           # b2
                pl.BlockSpec((1, e), const),                           # ln2 gamma
                pl.BlockSpec((1, e), const),                           # ln2 beta
            ],
            out_specs=pl.BlockSpec((None, s_pad, e), lambda b: (b, 0, 0)),
        ),
        compiler_params=pltpu.CompilerParams(dimension_semantics=("parallel",)),
    )(x, kmask,
      layer["wqkv_t"], layer["bqkv"], layer["wo_t"], layer["bo"],
      layer["ln1_g"], layer["ln1_b"], layer["w1_t"], layer["b1"],
      layer["w2_t"], layer["b2"], layer["ln2_g"], layer["ln2_b"])


def _label_attention_classifier(x, amask, packed):
    batch, s_pad, e = x.shape
    a = packed["la_w1_t"].shape[1]
    c_pad = packed["la_w2_t"].shape[1]
    const = lambda b: (0, 0)
    return pl.pallas_call(
        _label_attn_classifier_kernel,
        out_shape=jax.ShapeDtypeStruct((batch, c_pad), jnp.float32),
        grid_spec=pltpu.PrefetchScalarGridSpec(
            num_scalar_prefetch=0,
            grid=(batch,),
            in_specs=[
                pl.BlockSpec((None, s_pad, e), lambda b: (b, 0, 0)),   # encoded hidden
                pl.BlockSpec((None, s_pad, 1), lambda b: (b, 0, 0)),   # attn mask
                pl.BlockSpec((e, a), const),                           # la_w1_t
                pl.BlockSpec((1, a), const),                           # la_b1
                pl.BlockSpec((a, c_pad), const),                       # la_w2_t
                pl.BlockSpec((1, c_pad), const),                       # la_b2
                pl.BlockSpec((e, c_pad), const),                       # ff_w_t
                pl.BlockSpec((1, c_pad), const),                       # ff_b
            ],
            # Full-extent output block kept resident across the batch grid axis.
            out_specs=pl.BlockSpec((batch, c_pad), const),
        ),
        compiler_params=pltpu.CompilerParams(dimension_semantics=("arbitrary",)),
    )(x, amask, packed["la_w1_t"], packed["la_b1"], packed["la_w2_t"], packed["la_b2"],
      packed["ff_w_t"], packed["ff_b"])


def transicd_forward(ids, packed, *, num_heads, pad_idx=0):
    """Pallas equivalent of TransICD.forward (eval mode)."""
    batch, seq = ids.shape
    embed_w = packed["embed_w"]
    v, e = embed_w.shape
    s_pad = _round_up(max(seq, 8), 8)

    ids = ids.astype(jnp.int32)
    ids_pad = jnp.full((batch, s_pad), pad_idx, jnp.int32).at[:, :seq].set(ids)
    ids_flat = jnp.clip(ids_pad.reshape(-1), 0, v - 1)

    keep = (ids_pad != pad_idx).astype(jnp.float32)        # (B, S_pad)
    kmask = keep.reshape(batch, 1, s_pad)                  # encoder key-padding mask
    amask = keep.reshape(batch, s_pad, 1)                  # label-attention mask

    pos_emb = packed["pos_emb"][:s_pad]

    # TODO(synk): nn.Dropout layers are identity at inference and therefore omitted.
    x = _embed_positional(ids_flat, embed_w, pos_emb, batch, s_pad)
    for layer in packed["layers"]:
        x = _encoder_layer(x, kmask, layer, num_heads=num_heads)
    logits = _label_attention_classifier(x, amask, packed)
    return logits[:, :packed["num_classes"]]


# ---------------------------------------------------------------------------
# Parameter construction (synthetic, deterministic) + pure-JAX reference
# ---------------------------------------------------------------------------
def _make_positional_table(max_len, d_model):
    pos = jnp.arange(max_len, dtype=jnp.float32)[:, None]
    div = jnp.exp(jnp.arange(0, d_model, 2, dtype=jnp.float32)
                  * (-math.log(10000.0) / d_model))
    ang = pos * div
    pe = jnp.zeros((max_len, d_model), jnp.float32)
    pe = pe.at[:, 0::2].set(jnp.sin(ang))
    pe = pe.at[:, 1::2].set(jnp.cos(ang))
    return pe


def _init_params(key, *, vocab, embed, num_layers, ff_dim, attn_dim, num_classes, max_len):
    def nrm(k, shape, s):
        return (s * jax.random.normal(k, shape, jnp.float32)).astype(jnp.float32)

    keys = iter(jax.random.split(key, 16 * num_layers + 16))
    raw = {
        "embed_w": nrm(next(keys), (vocab, embed), 0.1),
        "pos_emb": _make_positional_table(max_len, embed),
        "la_w1": nrm(next(keys), (attn_dim, embed), 1.0 / math.sqrt(embed)),
        "la_b1": nrm(next(keys), (attn_dim,), 0.02),
        "la_w2": nrm(next(keys), (num_classes, attn_dim), 1.0 / math.sqrt(attn_dim)),
        "la_b2": nrm(next(keys), (num_classes,), 0.02),
        "ff_w": nrm(next(keys), (num_classes, embed), 1.0 / math.sqrt(embed)),
        "ff_b": nrm(next(keys), (num_classes,), 0.02),
        "layers": [],
    }
    for _ in range(num_layers):
        raw["layers"].append({
            "wqkv": nrm(next(keys), (3 * embed, embed), 1.0 / math.sqrt(embed)),
            "bqkv": nrm(next(keys), (3 * embed,), 0.02),
            "wo": nrm(next(keys), (embed, embed), 1.0 / math.sqrt(embed)),
            "bo": nrm(next(keys), (embed,), 0.02),
            "w1": nrm(next(keys), (ff_dim, embed), 1.0 / math.sqrt(embed)),
            "b1": nrm(next(keys), (ff_dim,), 0.02),
            "w2": nrm(next(keys), (embed, ff_dim), 1.0 / math.sqrt(ff_dim)),
            "b2": nrm(next(keys), (embed,), 0.02),
            "ln1_g": 1.0 + nrm(next(keys), (embed,), 0.05),
            "ln1_b": nrm(next(keys), (embed,), 0.02),
            "ln2_g": 1.0 + nrm(next(keys), (embed,), 0.05),
            "ln2_b": nrm(next(keys), (embed,), 0.02),
        })
    return raw


def _pack_params(raw, *, num_classes, class_pad):
    def row(v):
        return v.reshape(1, -1)

    def pad_classes(w):
        return jnp.pad(w, ((0, class_pad - num_classes), (0, 0)))

    packed = {
        "embed_w": raw["embed_w"],
        "pos_emb": raw["pos_emb"],
        "num_classes": num_classes,
        "la_w1_t": raw["la_w1"].T,                               # (E, A)
        "la_b1": row(raw["la_b1"]),
        "la_w2_t": pad_classes(raw["la_w2"]).T,                  # (A, C_pad)
        "la_b2": row(jnp.pad(raw["la_b2"], (0, class_pad - num_classes))),
        "ff_w_t": pad_classes(raw["ff_w"]).T,                    # (E, C_pad)
        "ff_b": row(jnp.pad(raw["ff_b"], (0, class_pad - num_classes))),
        "layers": [],
    }
    for lyr in raw["layers"]:
        packed["layers"].append({
            "wqkv_t": lyr["wqkv"].T,  "bqkv": row(lyr["bqkv"]),
            "wo_t": lyr["wo"].T,      "bo": row(lyr["bo"]),
            "w1_t": lyr["w1"].T,      "b1": row(lyr["b1"]),
            "w2_t": lyr["w2"].T,      "b2": row(lyr["b2"]),
            "ln1_g": row(lyr["ln1_g"]), "ln1_b": row(lyr["ln1_b"]),
            "ln2_g": row(lyr["ln2_g"]), "ln2_b": row(lyr["ln2_b"]),
        })
    return packed


def transicd_reference(ids, raw, *, num_heads, pad_idx=0):
    """Pure-JAX mirror of the PyTorch TransICD forward (eval mode)."""
    hp = lax.Precision.HIGHEST
    embed_w = raw["embed_w"]
    e = embed_w.shape[1]
    batch, seq = ids.shape
    dh = e // num_heads

    keep = ids != pad_idx
    x = embed_w[ids] * math.sqrt(e) + raw["pos_emb"][None, :seq]

    for lyr in raw["layers"]:
        qkv = jnp.einsum("bse,fe->bsf", x, lyr["wqkv"], precision=hp) + lyr["bqkv"]
        q = qkv[..., :e].reshape(batch, seq, num_heads, dh)
        k = qkv[..., e:2 * e].reshape(batch, seq, num_heads, dh)
        v = qkv[..., 2 * e:].reshape(batch, seq, num_heads, dh)
        s = jnp.einsum("bqhd,bkhd->bhqk", q, k, precision=hp) / math.sqrt(dh)
        s = jnp.where(keep[:, None, None, :], s, -1e9)
        p = jax.nn.softmax(s, axis=-1)
        ctx = jnp.einsum("bhqk,bkhd->bqhd", p, v, precision=hp).reshape(batch, seq, e)
        attn_out = jnp.einsum("bse,fe->bsf", ctx, lyr["wo"], precision=hp) + lyr["bo"]
        x = _layer_norm(x + attn_out, lyr["ln1_g"], lyr["ln1_b"])
        hmid = jax.nn.relu(jnp.einsum("bse,fe->bsf", x, lyr["w1"], precision=hp) + lyr["b1"])
        ff = jnp.einsum("bsf,ef->bse", hmid, lyr["w2"], precision=hp) + lyr["b2"]
        x = _layer_norm(x + ff, lyr["ln2_g"], lyr["ln2_b"])

    a1 = jnp.tanh(jnp.einsum("bse,ae->bsa", x, raw["la_w1"], precision=hp) + raw["la_b1"])
    o2 = jnp.einsum("bsa,ca->bsc", a1, raw["la_w2"], precision=hp) + raw["la_b2"]
    o2 = jnp.where(keep[:, :, None], o2, -1e9)
    attn_w = jnp.transpose(jax.nn.softmax(o2, axis=1), (0, 2, 1))       # (B, C, S)
    weighted = jnp.einsum("bcs,bse->bce", attn_w, x, precision=hp)      # (B, C, E)
    return jnp.sum(weighted * raw["ff_w"][None], axis=2) + raw["ff_b"]


if __name__ == "__main__":
    VOCAB, EMBED = 64, 128
    NUM_HEADS, NUM_LAYERS = 4, 2
    FF_SCALE, ATTN_EXPANSION = 2, 2
    NUM_CLASSES, PAD_IDX = 50, 0
    MAX_LEN = 64
    BATCH, SEQ = 2, 16

    key = jax.random.PRNGKey(0)
    k_params, k_ids = jax.random.split(key)

    raw = _init_params(k_params, vocab=VOCAB, embed=EMBED, num_layers=NUM_LAYERS,
                       ff_dim=FF_SCALE * EMBED, attn_dim=ATTN_EXPANSION * EMBED,
                       num_classes=NUM_CLASSES, max_len=MAX_LEN)
    packed = _pack_params(raw, num_classes=NUM_CLASSES,
                          class_pad=_round_up(NUM_CLASSES, 128))

    ids = jax.random.randint(k_ids, (BATCH, SEQ), 1, VOCAB, dtype=jnp.int32)
    ids = ids.at[0, SEQ - 3:].set(PAD_IDX)    # trailing pad tokens -> exercise masks
    ids = ids.at[1, SEQ - 5:].set(PAD_IDX)

    out = jax.block_until_ready(
        transicd_forward(ids, packed, num_heads=NUM_HEADS, pad_idx=PAD_IDX))
    ref = jax.block_until_ready(
        transicd_reference(ids, raw, num_heads=NUM_HEADS, pad_idx=PAD_IDX))

    assert out.shape == (BATCH, NUM_CLASSES)
    assert bool(jnp.all(jnp.isfinite(out)))
    assert jnp.allclose(out, ref, rtol=1e-2, atol=1e-2), "mismatch vs pure-JAX reference"
    print("KERNEL_OK")
</pallas_src>

<mosaic_0001>
module attributes {stable_mosaic.version = 11 : i64} {
  func.func @_embed_pos_kernel(%arg0: i32, %arg1: memref<32xi32, #tpu.memory_space<smem>>, %arg2: memref<64x128xf32, #tpu.memory_space<vmem>>, %arg3: memref<16x128xf32, #tpu.memory_space<vmem>>, %arg4: memref<1x16x128xf32, #tpu.memory_space<vmem>>) attributes {dimension_semantics = [#tpu.dimension_semantics<parallel>], iteration_bounds = array<i64: 2>, scalar_prefetch = 1 : i64, scratch_operands = 0 : i64, tpu.core_type = #tpu.core_type<tc>, window_params = [{pipeline_mode = #tpu.pipeline_mode<synchronous>, transform_indices = @transform_0, window_bounds = array<i64: 64, 128>}, {pipeline_mode = #tpu.pipeline_mode<synchronous>, transform_indices = @transform_1, window_bounds = array<i64: 16, 128>}, {transform_indices = @transform_2, window_bounds = array<i64: 1, 16, 128>}]} {
    %c16_i32 = arith.constant 16 : i32
    %0 = arith.muli %arg0, %c16_i32 : i32
    %c0_i32 = arith.constant 0 : i32
    %1 = arith.addi %0, %c0_i32 : i32
    %2 = arith.index_cast %1 : i32 to index
    %3 = memref.load %arg1[%2] : memref<32xi32, #tpu.memory_space<smem>>
    %4 = arith.index_cast %3 : i32 to index
    %c0 = arith.constant 0 : index
    %5 = vector.load %arg2[%4, %c0] : memref<64x128xf32, #tpu.memory_space<vmem>>, vector<1x128xf32>
    %cst = arith.constant 11.3137083 : f32
    %6 = vector.broadcast %cst : f32 to vector<1x128xf32>
    %7 = arith.mulf %5, %6 : vector<1x128xf32>
    %8 = arith.index_cast %c0_i32 : i32 to index
    %c0_0 = arith.constant 0 : index
    %9 = vector.load %arg3[%8, %c0_0] : memref<16x128xf32, #tpu.memory_space<vmem>>, vector<1x128xf32>
    %10 = arith.addf %7, %9 : vector<1x128xf32>
    %c0_1 = arith.constant 0 : index
    %11 = arith.index_cast %c0_i32 : i32 to index
    %c0_2 = arith.constant 0 : index
    %12 = vector.load %arg4[%c0_1, %11, %c0_2] : memref<1x16x128xf32, #tpu.memory_space<vmem>>, vector<1x1x128xf32>
    %13 = vector.shape_cast %12 : vector<1x1x128xf32> to vector<1x128xf32>
    %14 = vector.shape_cast %10 : vector<1x128xf32> to vector<1x1x128xf32>
    tpu.vector_store %arg4[%c0_1, %11, %c0_2], %14 {strides = array<i32>} : memref<1x16x128xf32, #tpu.memory_space<vmem>>, vector<1x1x128xf32>,
    %c1_i32 = arith.constant 1 : i32
    %15 = arith.addi %0, %c1_i32 : i32
    %16 = arith.index_cast %15 : i32 to index
    %17 = memref.load %arg1[%16] : memref<32xi32, #tpu.memory_space<smem>>
    %18 = arith.index_cast %17 : i32 to index
    %c0_3 = arith.constant 0 : index
    %19 = vector.load %arg2[%18, %c0_3] : memref<64x128xf32, #tpu.memory_space<vmem>>, vector<1x128xf32>
    %cst_4 = arith.constant 11.3137083 : f32
    %20 = vector.broadcast %cst_4 : f32 to vector<1x128xf32>
    %21 = arith.mulf %19, %20 : vector<1x128xf32>
    %22 = arith.index_cast %c1_i32 : i32 to index
    %c0_5 = arith.constant 0 : index
    %23 = vector.load %arg3[%22, %c0_5] : memref<16x128xf32, #tpu.memory_space<vmem>>, vector<1x128xf32>
    %24 = arith.addf %21, %23 : vector<1x128xf32>
    %c0_6 = arith.constant 0 : index
    %25 = arith.index_cast %c1_i32 : i32 to index
    %c0_7 = arith.constant 0 : index
    %26 = vector.load %arg4[%c0_6, %25, %c0_7] : memref<1x16x128xf32, #tpu.memory_space<vmem>>, vector<1x1x128xf32>
    %27 = vector.shape_cast %26 : vector<1x1x128xf32> to vector<1x128xf32>
    %28 = vector.shape_cast %24 : vector<1x128xf32> to vector<1x1x128xf32>
    tpu.vector_store %arg4[%c0_6, %25, %c0_7], %28 {strides = array<i32>} : memref<1x16x128xf32, #tpu.memory_space<vmem>>, vector<1x1x128xf32>,
    %c2_i32 = arith.constant 2 : i32
    %29 = arith.addi %0, %c2_i32 : i32
    %30 = arith.index_cast %29 : i32 to index
    %31 = memref.load %arg1[%30] : memref<32xi32, #tpu.memory_space<smem>>
    %32 = arith.index_cast %31 : i32 to index
    %c0_8 = arith.constant 0 : index
    %33 = vector.load %arg2[%32, %c0_8] : memref<64x128xf32, #tpu.memory_space<vmem>>, vector<1x128xf32>
    %cst_9 = arith.constant 11.3137083 : f32
    %34 = vector.broadcast %cst_9 : f32 to vector<1x128xf32>
    %35 = arith.mulf %33, %34 : vector<1x128xf32>
    %36 = arith.index_cast %c2_i32 : i32 to index
    %c0_10 = arith.constant 0 : index
    %37 = vector.load %arg3[%36, %c0_10] : memref<16x128xf32, #tpu.memory_space<vmem>>, vector<1x128xf32>
    %38 = arith.addf %35, %37 : vector<1x128xf32>
    %c0_11 = arith.constant 0 : index
    %39 = arith.index_cast %c2_i32 : i32 to index
    %c0_12 = arith.constant 0 : index
    %40 = vector.load %arg4[%c0_11, %39, %c0_12] : memref<1x16x128xf32, #tpu.memory_space<vmem>>, vector<1x1x128xf32>
    %41 = vector.shape_cast %40 : vector<1x1x128xf32> to vector<1x128xf32>
    %42 = vector.shape_cast %38 : vector<1x128xf32> to vector<1x1x128xf32>
    tpu.vector_store %arg4[%c0_11, %39, %c0_12], %42 {strides = array<i32>} : memref<1x16x128xf32, #tpu.memory_space<vmem>>, vector<1x1x128xf32>,
    %c3_i32 = arith.constant 3 : i32
    %43 = arith.addi %0, %c3_i32 : i32
    %44 = arith.index_cast %43 : i32 to index
    %45 = memref.load %arg1[%44] : memref<32xi32, #tpu.memory_space<smem>>
    %46 = arith.index_cast %45 : i32 to index
    %c0_13 = arith.constant 0 : index
    %47 = vector.load %arg2[%46, %c0_13] : memref<64x128xf32, #tpu.memory_space<vmem>>, vector<1x128xf32>
    %cst_14 = arith.constant 11.3137083 : f32
    %48 = vector.broadcast %cst_14 : f32 to vector<1x128xf32>
    %49 = arith.mulf %47, %48 : vector<1x128xf32>
    %50 = arith.index_cast %c3_i32 : i32 to index
    %c0_15 = arith.constant 0 : index
    %51 = vector.load %arg3[%50, %c0_15] : memref<16x128xf32, #tpu.memory_space<vmem>>, vector<1x128xf32>
    %52 = arith.addf %49, %51 : vector<1x128xf32>
    %c0_16 = arith.constant 0 : index
    %53 = arith.index_cast %c3_i32 : i32 to index
    %c0_17 = arith.constant 0 : index
    %54 = vector.load %arg4[%c0_16, %53, %c0_17] : memref<1x16x128xf32, #tpu.memory_space<vmem>>, vector<1x1x128xf32>
    %55 = vector.shape_cast %54 : vector<1x1x128xf32> to vector<1x128xf32>
    %56 = vector.shape_cast %52 : vector<1x128xf32> to vector<1x1x128xf32>
    tpu.vector_store %arg4[%c0_16, %53, %c0_17], %56 {strides = array<i32>} : memref<1x16x128xf32, #tpu.memory_space<vmem>>, vector<1x1x128xf32>,
    %c4_i32 = arith.constant 4 : i32
    %57 = arith.addi %0, %c4_i32 : i32
    %58 = arith.index_cast %57 : i32 to index
    %59 = memref.load %arg1[%58] : memref<32xi32, #tpu.memory_space<smem>>
    %60 = arith.index_cast %59 : i32 to index
    %c0_18 = arith.constant 0 : index
    %61 = vector.load %arg2[%60, %c0_18] : memref<64x128xf32, #tpu.memory_space<vmem>>, vector<1x128xf32>
    %cst_19 = arith.constant 11.3137083 : f32
    %62 = vector.broadcast %cst_19 : f32 to vector<1x128xf32>
    %63 = arith.mulf %61, %62 : vector<1x128xf32>
    %64 = arith.index_cast %c4_i32 : i32 to index
    %c0_20 = arith.constant 0 : index
    %65 = vector.load %arg3[%64, %c0_20] : memref<16x128xf32, #tpu.memory_space<vmem>>, vector<1x128xf32>
    %66 = arith.addf %63, %65 : vector<1x128xf32>
    %c0_21 = arith.constant 0 : index
    %67 = arith.index_cast %c4_i32 : i32 to index
    %c0_22 = arith.constant 0 : index
    %68 = vector.load %arg4[%c0_21, %67, %c0_22] : memref<1x16x128xf32, #tpu.memory_space<vmem>>, vector<1x1x128xf32>
    %69 = vector.shape_cast %68 : vector<1x1x128xf32> to vector<1x128xf32>
    %70 = vector.shape_cast %66 : vector<1x128xf32> to vector<1x1x128xf32>
    tpu.vector_store %arg4[%c0_21, %67, %c0_22], %70 {strides = array<i32>} : memref<1x16x128xf32, #tpu.memory_space<vmem>>, vector<1x1x128xf32>,
    %c5_i32 = arith.constant 5 : i32
    %71 = arith.addi %0, %c5_i32 : i32
    %72 = arith.index_cast %71 : i32 to index
    %73 = memref.load %arg1[%72] : memref<32xi32, #tpu.memory_space<smem>>
    %74 = arith.index_cast %73 : i32 to index
    %c0_23 = arith.constant 0 : index
    %75 = vector.load %arg2[%74, %c0_23] : memref<64x128xf32, #tpu.memory_space<vmem>>, vector<1x128xf32>
    %cst_24 = arith.constant 11.3137083 : f32
    %76 = vector.broadcast %cst_24 : f32 to vector<1x128xf32>
    %77 = arith.mulf %75, %76 : vector<1x128xf32>
    %78 = arith.index_cast %c5_i32 : i32 to index
    %c0_25 = arith.constant 0 : index
    %79 = vector.load %arg3[%78, %c0_25] : memref<16x128xf32, #tpu.memory_space<vmem>>, vector<1x128xf32>
    %80 = arith.addf %77, %79 : vector<1x128xf32>
    %c0_26 = arith.constant 0 : index
    %81 = arith.index_cast %c5_i32 : i32 to index
    %c0_27 = arith.constant 0 : index
    %82 = vector.load %arg4[%c0_26, %81, %c0_27] : memref<1x16x128xf32, #tpu.memory_space<vmem>>, vector<1x1x128xf32>
    %83 = vector.shape_cast %82 : vector<1x1x128xf32> to vector<1x128xf32>
    %84 = vector.shape_cast %80 : vector<1x128xf32> to vector<1x1x128xf32>
    tpu.vector_store %arg4[%c0_26, %81, %c0_27], %84 {strides = array<i32>} : memref<1x16x128xf32, #tpu.memory_space<vmem>>, vector<1x1x128xf32>,
    %c6_i32 = arith.constant 6 : i32
    %85 = arith.addi %0, %c6_i32 : i32
    %86 = arith.index_cast %85 : i32 to index
    %87 = memref.load %arg1[%86] : memref<32xi32, #tpu.memory_space<smem>>
    %88 = arith.index_cast %87 : i32 to index
    %c0_28 = arith.constant 0 : index
    %89 = vector.load %arg2[%88, %c0_28] : memref<64x128xf32, #tpu.memory_space<vmem>>, vector<1x128xf32>
    %cst_29 = arith.constant 11.3137083 : f32
    %90 = vector.broadcast %cst_29 : f32 to vector<1x128xf32>
    %91 = arith.mulf %89, %90 : vector<1x128xf32>
    %92 = arith.index_cast %c6_i32 : i32 to index
    %c0_30 = arith.constant 0 : index
    %93 = vector.load %arg3[%92, %c0_30] : memref<16x128xf32, #tpu.memory_space<vmem>>, vector<1x128xf32>
    %94 = arith.addf %91, %93 : vector<1x128xf32>
    %c0_31 = arith.constant 0 : index
    %95 = arith.index_cast %c6_i32 : i32 to index
    %c0_32 = arith.constant 0 : index
    %96 = vector.load %arg4[%c0_31, %95, %c0_32] : memref<1x16x128xf32, #tpu.memory_space<vmem>>, vector<1x1x128xf32>
    %97 = vector.shape_cast %96 : vector<1x1x128xf32> to vector<1x128xf32>
    %98 = vector.shape_cast %94 : vector<1x128xf32> to vector<1x1x128xf32>
    tpu.vector_store %arg4[%c0_31, %95, %c0_32], %98 {strides = array<i32>} : memref<1x16x128xf32, #tpu.memory_space<vmem>>, vector<1x1x128xf32>,
    %c7_i32 = arith.constant 7 : i32
    %99 = arith.addi %0, %c7_i32 : i32
    %100 = arith.index_cast %99 : i32 to index
    %101 = memref.load %arg1[%100] : memref<32xi32, #tpu.memory_space<smem>>
    %102 = arith.index_cast %101 : i32 to index
    %c0_33 = arith.constant 0 : index
    %103 = vector.load %arg2[%102, %c0_33] : memref<64x128xf32, #tpu.memory_space<vmem>>, vector<1x128xf32>
    %cst_34 = arith.constant 11.3137083 : f32
    %104 = vector.broadcast %cst_34 : f32 to vector<1x128xf32>
    %105 = arith.mulf %103, %104 : vector<1x128xf32>
    %106 = arith.index_cast %c7_i32 : i32 to index
    %c0_35 = arith.constant 0 : index
    %107 = vector.load %arg3[%106, %c0_35] : memref<16x128xf32, #tpu.memory_space<vmem>>, vector<1x128xf32>
    %108 = arith.addf %105, %107 : vector<1x128xf32>
    %c0_36 = arith.constant 0 : index
    %109 = arith.index_cast %c7_i32 : i32 to index
    %c0_37 = arith.constant 0 : index
    %110 = vector.load %arg4[%c0_36, %109, %c0_37] : memref<1x16x128xf32, #tpu.memory_space<vmem>>, vector<1x1x128xf32>
    %111 = vector.shape_cast %110 : vector<1x1x128xf32> to vector<1x128xf32>
    %112 = vector.shape_cast %108 : vector<1x128xf32> to vector<1x1x128xf32>
    tpu.vector_store %arg4[%c0_36, %109, %c0_37], %112 {strides = array<i32>} : memref<1x16x128xf32, #tpu.memory_space<vmem>>, vector<1x1x128xf32>,
    %c8_i32 = arith.constant 8 : i32
    %113 = arith.addi %0, %c8_i32 : i32
    %114 = arith.index_cast %113 : i32 to index
    %115 = memref.load %arg1[%114] : memref<32xi32, #tpu.memory_space<smem>>
    %116 = arith.index_cast %115 : i32 to index
    %c0_38 = arith.constant 0 : index
    %117 = vector.load %arg2[%116, %c0_38] : memref<64x128xf32, #tpu.memory_space<vmem>>, vector<1x128xf32>
    %cst_39 = arith.constant 11.3137083 : f32
    %118 = vector.broadcast %cst_39 : f32 to vector<1x128xf32>
    %119 = arith.mulf %117, %118 : vector<1x128xf32>
    %120 = arith.index_cast %c8_i32 : i32 to index
    %c0_40 = arith.constant 0 : index
    %121 = vector.load %arg3[%120, %c0_40] : memref<16x128xf32, #tpu.memory_space<vmem>>, vector<1x128xf32>
    %122 = arith.addf %119, %121 : vector<1x128xf32>
    %c0_41 = arith.constant 0 : index
    %123 = arith.index_cast %c8_i32 : i32 to index
    %c0_42 = arith.constant 0 : index
    %124 = vector.load %arg4[%c0_41, %123, %c0_42] : memref<1x16x128xf32, #tpu.memory_space<vmem>>, vector<1x1x128xf32>
    %125 = vector.shape_cast %124 : vector<1x1x128xf32> to vector<1x128xf32>
    %126 = vector.shape_cast %122 : vector<1x128xf32> to vector<1x1x128xf32>
    tpu.vector_store %arg4[%c0_41, %123, %c0_42], %126 {strides = array<i32>} : memref<1x16x128xf32, #tpu.memory_space<vmem>>, vector<1x1x128xf32>,
    %c9_i32 = arith.constant 9 : i32
    %127 = arith.addi %0, %c9_i32 : i32
    %128 = arith.index_cast %127 : i32 to index
    %129 = memref.load %arg1[%128] : memref<32xi32, #tpu.memory_space<smem>>
    %130 = arith.index_cast %129 : i32 to index
    %c0_43 = arith.constant 0 : index
    %131 = vector.load %arg2[%130, %c0_43] : memref<64x128xf32, #tpu.memory_space<vmem>>, vector<1x128xf32>
    %cst_44 = arith.constant 11.3137083 : f32
    %132 = vector.broadcast %cst_44 : f32 to vector<1x128xf32>
    %133 = arith.mulf %131, %132 : vector<1x128xf32>
    %134 = arith.index_cast %c9_i32 : i32 to index
    %c0_45 = arith.constant 0 : index
    %135 = vector.load %arg3[%134, %c0_45] : memref<16x128xf32, #tpu.memory_space<vmem>>, vector<1x128xf32>
    %136 = arith.addf %133, %135 : vector<1x128xf32>
    %c0_46 = arith.constant 0 : index
    %137 = arith.index_cast %c9_i32 : i32 to index
    %c0_47 = arith.constant 0 : index
    %138 = vector.load %arg4[%c0_46, %137, %c0_47] : memref<1x16x128xf32, #tpu.memory_space<vmem>>, vector<1x1x128xf32>
    %139 = vector.shape_cast %138 : vector<1x1x128xf32> to vector<1x128xf32>
    %140 = vector.shape_cast %136 : vector<1x128xf32> to vector<1x1x128xf32>
    tpu.vector_store %arg4[%c0_46, %137, %c0_47], %140 {strides = array<i32>} : memref<1x16x128xf32, #tpu.memory_space<vmem>>, vector<1x1x128xf32>,
    %c10_i32 = arith.constant 10 : i32
    %141 = arith.addi %0, %c10_i32 : i32
    %142 = arith.index_cast %141 : i32 to index
    %143 = memref.load %arg1[%142] : memref<32xi32, #tpu.memory_space<smem>>
    %144 = arith.index_cast %143 : i32 to index
    %c0_48 = arith.constant 0 : index
    %145 = vector.load %arg2[%144, %c0_48] : memref<64x128xf32, #tpu.memory_space<vmem>>, vector<1x128xf32>
    %cst_49 = arith.constant 11.3137083 : f32
    %146 = vector.broadcast %cst_49 : f32 to vector<1x128xf32>
    %147 = arith.mulf %145, %146 : vector<1x128xf32>
    %148 = arith.index_cast %c10_i32 : i32 to index
    %c0_50 = arith.constant 0 : index
    %149 = vector.load %arg3[%148, %c0_50] : memref<16x128xf32, #tpu.memory_space<vmem>>, vector<1x128xf32>
    %150 = arith.addf %147, %149 : vector<1x128xf32>
    %c0_51 = arith.constant 0 : index
    %151 = arith.index_cast %c10_i32 : i32 to index
    %c0_52 = arith.constant 0 : index
    %152 = vector.load %arg4[%c0_51, %151, %c0_52] : memref<1x16x128xf32, #tpu.memory_space<vmem>>, vector<1x1x128xf32>
    %153 = vector.shape_cast %152 : vector<1x1x128xf32> to vector<1x128xf32>
    %154 = vector.shape_cast %150 : vector<1x128xf32> to vector<1x1x128xf32>
    tpu.vector_store %arg4[%c0_51, %151, %c0_52], %154 {strides = array<i32>} : memref<1x16x128xf32, #tpu.memory_space<vmem>>, vector<1x1x128xf32>,
    %c11_i32 = arith.constant 11 : i32
    %155 = arith.addi %0, %c11_i32 : i32
    %156 = arith.index_cast %155 : i32 to index
    %157 = memref.load %arg1[%156] : memref<32xi32, #tpu.memory_space<smem>>
    %158 = arith.index_cast %157 : i32 to index
    %c0_53 = arith.constant 0 : index
    %159 = vector.load %arg2[%158, %c0_53] : memref<64x128xf32, #tpu.memory_space<vmem>>, vector<1x128xf32>
    %cst_54 = arith.constant 11.3137083 : f32
    %160 = vector.broadcast %cst_54 : f32 to vector<1x128xf32>
    %161 = arith.mulf %159, %160 : vector<1x128xf32>
    %162 = arith.index_cast %c11_i32 : i32 to index
    %c0_55 = arith.constant 0 : index
    %163 = vector.load %arg3[%162, %c0_55] : memref<16x128xf32, #tpu.memory_space<vmem>>, vector<1x128xf32>
    %164 = arith.addf %161, %163 : vector<1x128xf32>
    %c0_56 = arith.constant 0 : index
    %165 = arith.index_cast %c11_i32 : i32 to index
    %c0_57 = arith.constant 0 : index
    %166 = vector.load %arg4[%c0_56, %165, %c0_57] : memref<1x16x128xf32, #tpu.memory_space<vmem>>, vector<1x1x128xf32>
    %167 = vector.shape_cast %166 : vector<1x1x128xf32> to vector<1x128xf32>
    %168 = vector.shape_cast %164 : vector<1x128xf32> to vector<1x1x128xf32>
    tpu.vector_store %arg4[%c0_56, %165, %c0_57], %168 {strides = array<i32>} : memref<1x16x128xf32, #tpu.memory_space<vmem>>, vector<1x1x128xf32>,
    %c12_i32 = arith.constant 12 : i32
    %169 = arith.addi %0, %c12_i32 : i32
    %170 = arith.index_cast %169 : i32 to index
    %171 = memref.load %arg1[%170] : memref<32xi32, #tpu.memory_space<smem>>
    %172 = arith.index_cast %171 : i32 to index
    %c0_58 = arith.constant 0 : index
    %173 = vector.load %arg2[%172, %c0_58] : memref<64x128xf32, #tpu.memory_space<vmem>>, vector<1x128xf32>
    %cst_59 = arith.constant 11.3137083 : f32
    %174 = vector.broadcast %cst_59 : f32 to vector<1x128xf32>
    %175 = arith.mulf %173, %174 : vector<1x128xf32>
    %176 = arith.index_cast %c12_i32 : i32 to index
    %c0_60 = arith.constant 0 : index
    %177 = vector.load %arg3[%176, %c0_60] : memref<16x128xf32, #tpu.memory_space<vmem>>, vector<1x128xf32>
    %178 = arith.addf %175, %177 : vector<1x128xf32>
    %c0_61 = arith.constant 0 : index
    %179 = arith.index_cast %c12_i32 : i32 to index
    %c0_62 = arith.constant 0 : index
    %180 = vector.load %arg4[%c0_61, %179, %c0_62] : memref<1x16x128xf32, #tpu.memory_space<vmem>>, vector<1x1x128xf32>
    %181 = vector.shape_cast %180 : vector<1x1x128xf32> to vector<1x128xf32>
    %182 = vector.shape_cast %178 : vector<1x128xf32> to vector<1x1x128xf32>
    tpu.vector_store %arg4[%c0_61, %179, %c0_62], %182 {strides = array<i32>} : memref<1x16x128xf32, #tpu.memory_space<vmem>>, vector<1x1x128xf32>,
    %c13_i32 = arith.constant 13 : i32
    %183 = arith.addi %0, %c13_i32 : i32
    %184 = arith.index_cast %183 : i32 to index
    %185 = memref.load %arg1[%184] : memref<32xi32, #tpu.memory_space<smem>>
    %186 = arith.index_cast %185 : i32 to index
    %c0_63 = arith.constant 0 : index
    %187 = vector.load %arg2[%186, %c0_63] : memref<64x128xf32, #tpu.memory_space<vmem>>, vector<1x128xf32>
    %cst_64 = arith.constant 11.3137083 : f32
    %188 = vector.broadcast %cst_64 : f32 to vector<1x128xf32>
    %189 = arith.mulf %187, %188 : vector<1x128xf32>
    %190 = arith.index_cast %c13_i32 : i32 to index
    %c0_65 = arith.constant 0 : index
    %191 = vector.load %arg3[%190, %c0_65] : memref<16x128xf32, #tpu.memory_space<vmem>>, vector<1x128xf32>
    %192 = arith.addf %189, %191 : vector<1x128xf32>
    %c0_66 = arith.constant 0 : index
    %193 = arith.index_cast %c13_i32 : i32 to index
    %c0_67 = arith.constant 0 : index
    %194 = vector.load %arg4[%c0_66, %193, %c0_67] : memref<1x16x128xf32, #tpu.memory_space<vmem>>, vector<1x1x128xf32>
    %195 = vector.shape_cast %194 : vector<1x1x128xf32> to vector<1x128xf32>
    %196 = vector.shape_cast %192 : vector<1x128xf32> to vector<1x1x128xf32>
    tpu.vector_store %arg4[%c0_66, %193, %c0_67], %196 {strides = array<i32>} : memref<1x16x128xf32, #tpu.memory_space<vmem>>, vector<1x1x128xf32>,
    %c14_i32 = arith.constant 14 : i32
    %197 = arith.addi %0, %c14_i32 : i32
    %198 = arith.index_cast %197 : i32 to index
    %199 = memref.load %arg1[%198] : memref<32xi32, #tpu.memory_space<smem>>
    %200 = arith.index_cast %199 : i32 to index
    %c0_68 = arith.constant 0 : index
    %201 = vector.load %arg2[%200, %c0_68] : memref<64x128xf32, #tpu.memory_space<vmem>>, vector<1x128xf32>
    %cst_69 = arith.constant 11.3137083 : f32
    %202 = vector.broadcast %cst_69 : f32 to vector<1x128xf32>
    %203 = arith.mulf %201, %202 : vector<1x128xf32>
    %204 = arith.index_cast %c14_i32 : i32 to index
    %c0_70 = arith.constant 0 : index
    %205 = vector.load %arg3[%204, %c0_70] : memref<16x128xf32, #tpu.memory_space<vmem>>, vector<1x128xf32>
    %206 = arith.addf %203, %205 : vector<1x128xf32>
    %c0_71 = arith.constant 0 : index
    %207 = arith.index_cast %c14_i32 : i32 to index
    %c0_72 = arith.constant 0 : index
    %208 = vector.load %arg4[%c0_71, %207, %c0_72] : memref<1x16x128xf32, #tpu.memory_space<vmem>>, vector<1x1x128xf32>
    %209 = vector.shape_cast %208 : vector<1x1x128xf32> to vector<1x128xf32>
    %210 = vector.shape_cast %206 : vector<1x128xf32> to vector<1x1x128xf32>
    tpu.vector_store %arg4[%c0_71, %207, %c0_72], %210 {strides = array<i32>} : memref<1x16x128xf32, #tpu.memory_space<vmem>>, vector<1x1x128xf32>,
    %c15_i32 = arith.constant 15 : i32
    %211 = arith.addi %0, %c15_i32 : i32
    %212 = arith.index_cast %211 : i32 to index
    %213 = memref.load %arg1[%212] : memref<32xi32, #tpu.memory_space<smem>>
    %214 = arith.index_cast %213 : i32 to index
    %c0_73 = arith.constant 0 : index
    %215 = vector.load %arg2[%214, %c0_73] : memref<64x128xf32, #tpu.memory_space<vmem>>, vector<1x128xf32>
    %cst_74 = arith.constant 11.3137083 : f32
    %216 = vector.broadcast %cst_74 : f32 to vector<1x128xf32>
    %217 = arith.mulf %215, %216 : vector<1x128xf32>
    %218 = arith.index_cast %c15_i32 : i32 to index
    %c0_75 = arith.constant 0 : index
    %219 = vector.load %arg3[%218, %c0_75] : memref<16x128xf32, #tpu.memory_space<vmem>>, vector<1x128xf32>
    %220 = arith.addf %217, %219 : vector<1x128xf32>
    %c0_76 = arith.constant 0 : index
    %221 = arith.index_cast %c15_i32 : i32 to index
    %c0_77 = arith.constant 0 : index
    %222 = vector.load %arg4[%c0_76, %221, %c0_77] : memref<1x16x128xf32, #tpu.memory_space<vmem>>, vector<1x1x128xf32>
    %223 = vector.shape_cast %222 : vector<1x1x128xf32> to vector<1x128xf32>
    %224 = vector.shape_cast %220 : vector<1x128xf32> to vector<1x1x128xf32>
    tpu.vector_store %arg4[%c0_76, %221, %c0_77], %224 {strides = array<i32>} : memref<1x16x128xf32, #tpu.memory_space<vmem>>, vector<1x1x128xf32>,
    %c16_i32_78 = arith.constant 16 : i32
    return
  }
  func.func @transform_0(%arg0: i32, %arg1: memref<32xi32, #tpu.memory_space<smem>>) -> (i32, i32) {
    %c0_i32 = arith.constant 0 : i32
    %c0_i32_0 = arith.constant 0 : i32
    %c0_i32_1 = arith.constant 0 : i32
    return %c0_i32, %c0_i32_0 : i32, i32
  }
  func.func @transform_1(%arg0: i32, %arg1: memref<32xi32, #tpu.memory_space<smem>>) -> (i32, i32) {
    %c0_i32 = arith.constant 0 : i32
    %c0_i32_0 = arith.constant 0 : i32
    %c0_i32_1 = arith.constant 0 : i32
    return %c0_i32, %c0_i32_0 : i32, i32
  }
  func.func @transform_2(%arg0: i32, %arg1: memref<32xi32, #tpu.memory_space<smem>>) -> (i32, i32, i32) {
    %c0_i32 = arith.constant 0 : i32
    %c0_i32_0 = arith.constant 0 : i32
    %c0_i32_1 = arith.constant 0 : i32
    return %arg0, %c0_i32, %c0_i32_0 : i32, i32, i32
  }
}

</mosaic_0001>

<llo_original>
// kernel: tpu_custom_call.1
$region0: #{tpu_custom_call.1}
  #allocation0 [shape = 'u32[]', space=smem, size = 0x4, offset = 0x4, fixed_abs, tag = 'smem constant byte address 0x4 - core index']
  #allocation1 [shape = 'u32[144,128]{1,0:T(1,128)}', space=vmem, size = 0x12000, scoped, tag = 'internal scratch']
  #allocation2 [shape = 's32[1]{0}', space=sflag, size = 0x4, scoped, tag = 'scoped memory for tpu_custom_call.1']
  #allocation3 [shape = 'u8[512]{0}', space=smem, size = 0x200, scoped, tag = 'prefetched SMEM operand 0']
  %s0 = inlined_call_operand.hbm [shape: s32[32], index: 0, kind: input, shape index: {}]
  %s1 = inlined_call_operand.hbm [shape: f32[64,128], index: 1, kind: input, shape index: {}]
  %s2 = inlined_call_operand.hbm [shape: f32[16,128], index: 2, kind: input, shape index: {}]
  %s3 = inlined_call_operand.hbm [shape: f32[2,16,128], index: 3, kind: output, shape index: {}]
  %s4 = sld [smem:[#allocation0]]
  $region49: #{tpu_custom_call.1} parent=0
    _
  %s6 = ssub.s32 1, %s4
  %s7 = scalar_select 0, %s6, %s4
  %9 = dma.hbm_to_smem %s0, 16, [#allocation3], [#allocation2]
  %10 = dma.done [#allocation2], 16
  %11 = sfence
  $region1: #{tpu_custom_call.1} parent=0
    #allocation4 [shape = 'u8[32768]{0}', space=vmem, size = 0x8000, scoped, tag = 'input window, operand 1, single buffered']
    #allocation5 [shape = 's32[2]{0}', space=sflag, size = 0x8, scoped, tag = 'scoped memory for tpu_custom_call.1']
    #allocation6 [shape = 's32[2]{0}', space=sflag, size = 0x8, scoped, tag = 'scoped memory for tpu_custom_call.1']
    #allocation7 [shape = 'u8[8192]{0}', space=vmem, size = 0x2000, scoped, tag = 'input window, operand 2, single buffered']
    #allocation8 [shape = 's32[1]{0}', space=sflag, size = 0x4, scoped, tag = 'scoped memory for tpu_custom_call.1']
    #allocation9 [shape = 'u8[16384]{0}', space=vmem, size = 0x4000, scoped, tag = 'output window, operand 0']
    %12 = vsyncpa [#allocation5], 0
    %13 = vsyncpa [#allocation8], 0
    %14 = vsyncpa [#allocation6], 0
    %s15 = scalar_lea.sflag [#allocation6], 1
    %16 = vsyncpa %s15, 0
    loop: start=0, step=1, limit=4
    $region2: #{tpu_custom_call.1} parent=1 // loop_pre_header
      _
    $region3: #{tpu_custom_call.1} parent=1 // loop_header
      %s18 = sphi 0, %s22
      %p19 = scmp.ge.s32.totalorder %s18, 4
      %s26 = sphi 0, %s26
      %s28 = sphi 0, %s26
      %s29 = sphi 0, %s28
      %s43 = sphi 0, %s29
      %s47 = sphi 0, %s47
      %s49 = sphi 0, %s47
      %s50 = sphi 0, %s49
      %s64 = sphi 0, %s50
      %s70 = sphi 0, %s72
      %s73 = sphi 0, %s70
      %s74 = sphi 0, %s73
      %s90 = sphi 0, %s74
    $region4: #{tpu_custom_call.1} parent=1 // loop_header_branch
      %21 = sbr.rel (%p19) target = $region8
    $region5: #{tpu_custom_call.1} parent=1 // loop_body
      %s23 = ssub.s32 %s18, 1
      %s24 = ssub.s32 %s18, 2
      %s25 = sadd.s32 %s18, 1
      %s27 = sadd.s32 %s26, 1
      %p30 = scmp.eq.s32.totalorder %s18, 1
      %p31 = scmp.ne.s32.totalorder %s26, %s28
      %p32 = scmp.eq.s32.totalorder %s18, 0
      %p33 = por %p31, %p32
      %p34 = scmp.ne.s32.totalorder %s26, %s28
      %p35 = scmp.eq.s32.totalorder %s23, 1
      %p36 = por %p34, %p35
      %p37 = scmp.ne.s32.totalorder %s28, %s29
      %p38 = scmp.eq.s32.totalorder %s23, 0
      %p39 = por %p37, %p38
      %p40 = scmp.ne.s32.totalorder %s28, %s29
      %p41 = scmp.eq.s32.totalorder %s24, 1
      %p42 = por %p40, %p41
      %p44 = scmp.ne.s32.totalorder %s29, %s43
      %p45 = scmp.eq.s32.totalorder %s24, 0
      %p46 = por %p44, %p45
      %s48 = sadd.s32 %s47, 1
      %p51 = scmp.eq.s32.totalorder %s18, 1
      %p52 = scmp.ne.s32.totalorder %s47, %s49
      %p53 = scmp.eq.s32.totalorder %s18, 0
      %p54 = por %p52, %p53
      %p55 = scmp.ne.s32.totalorder %s47, %s49
      %p56 = scmp.eq.s32.totalorder %s23, 1
      %p57 = por %p55, %p56
      %p58 = scmp.ne.s32.totalorder %s49, %s50
      %p59 = scmp.eq.s32.totalorder %s23, 0
      %p60 = por %p58, %p59
      %p61 = scmp.ne.s32.totalorder %s49, %s50
      %p62 = scmp.eq.s32.totalorder %s24, 1
      %p63 = por %p61, %p62
      %p65 = scmp.ne.s32.totalorder %s50, %s64
      %p66 = scmp.eq.s32.totalorder %s24, 0
      %p67 = por %p65, %p66
      %s68 = ssub.s32 %s18, %s25
      %p69 = scmp.eq.s32.totalorder %s68, 0
      %s71 = sadd.s32 %s70, 1
      %s72 = scalar_select %p69, %s70, %s71
      %p75 = pneg %p69
      %p76 = scmp.eq.s32.totalorder %s18, 1
      %p77 = por %p75, %p76
      %p78 = scmp.ne.s32.totalorder %s70, %s73
      %p79 = scmp.eq.s32.totalorder %s18, 0
      %p80 = por %p78, %p79
      %p81 = scmp.ne.s32.totalorder %s70, %s73
      %p82 = scmp.eq.s32.totalorder %s23, 1
      %p83 = por %p81, %p82
      %p84 = scmp.ne.s32.totalorder %s73, %s74
      %p85 = scmp.eq.s32.totalorder %s23, 0
      %p86 = por %p84, %p85
      %p87 = scmp.ne.s32.totalorder %s73, %s74
      %p88 = scmp.eq.s32.totalorder %s24, 1
      %p89 = por %p87, %p88
      %p91 = scmp.ne.s32.totalorder %s74, %s90
      %p92 = scmp.eq.s32.totalorder %s24, 0
      %p93 = por %p91, %p92
      %p94 = scmp.le.s32.totalorder 1, %s18
      %p95 = scmp.lt.s32.totalorder %s18, 3
      %p96 = pnand %p94, %p95
      %p97 = pneg %p96
      // Predicated region
      $region9: #{tpu_custom_call.1} parent=5 // pred_check
        _
      $region10: #{tpu_custom_call.1} parent=5 // pred_check_branch
        %99 = sbr.rel (%p96) target = $region12
      $region11: #{tpu_custom_call.1} parent=5 // pred_region
        %s100 = ssub.s32 %s18, 1
        // Predicated region
        $region13: #{tpu_custom_call.1} parent=11 // pred_check
          %p101 = pneg %p39
        $region14: #{tpu_custom_call.1} parent=11 // pred_check_branch
          %103 = sbr.rel (%p101) target = $region16
        $region15: #{tpu_custom_call.1} parent=11 // pred_region
          %s105 = ssub.s32 1024, 1024
          %106 = vsyncadd [#allocation5], %s105
          %s107 = sshll.u32 [#allocation4], 4
          %s108 = int_to_ptr.vmem [resolvable:$true] %s107
          %113 = dma.hbm_to_vmem [thread:$0]  %s1, 1024, %s108, [#allocation5], 128, 128, 8
        $region16: #{tpu_custom_call.1} parent=11 // pred_fallthru
          _
        // Predicated region
        $region17: #{tpu_custom_call.1} parent=11 // pred_check
          %p114 = pneg %p60
        $region18: #{tpu_custom_call.1} parent=11 // pred_check_branch
          %116 = sbr.rel (%p114) target = $region20
        $region19: #{tpu_custom_call.1} parent=11 // pred_region
          %s118 = ssub.s32 256, 256
          %119 = vsyncadd [#allocation8], %s118
          %s120 = sshll.u32 [#allocation7], 4
          %s121 = int_to_ptr.vmem [resolvable:$true] %s120
          %126 = dma.hbm_to_vmem [thread:$0]  %s2, 256, %s121, [#allocation8], 128, 128, 8
        $region20: #{tpu_custom_call.1} parent=11 // pred_fallthru
          _
      $region12: #{tpu_custom_call.1} parent=5 // pred_fallthru
        _
      %p127 = scmp.lt.s32.totalorder %s18, 2
      // Predicated region
      $region21: #{tpu_custom_call.1} parent=5 // pred_check
        %p128 = pneg %p127
      $region22: #{tpu_custom_call.1} parent=5 // pred_check_branch
        %130 = sbr.rel (%p128) target = $region24
      $region23: #{tpu_custom_call.1} parent=5 // pred_region
        _
      $region24: #{tpu_custom_call.1} parent=5 // pred_fallthru
        _
      %p131 = scmp.le.s32.totalorder 1, %s18
      %p132 = scmp.lt.s32.totalorder %s18, 3
      %p133 = pnand %p131, %p132
      %p134 = pneg %p133
      // Predicated region
      $region25: #{tpu_custom_call.1} parent=5 // pred_check
        _
      $region26: #{tpu_custom_call.1} parent=5 // pred_check_branch
        %136 = sbr.rel (%p133) target = $region28
      $region27: #{tpu_custom_call.1} parent=5 // pred_region
        %s137 = ssub.s32 %s18, 1
        // Predicated region
        $region29: #{tpu_custom_call.1} parent=27 // pred_check
          %p138 = pneg %p39
        $region30: #{tpu_custom_call.1} parent=27 // pred_check_branch
          %140 = sbr.rel (%p138) target = $region32
        $region31: #{tpu_custom_call.1} parent=27 // pred_region
          %141 = dma.done [#allocation5], 1024
        $region32: #{tpu_custom_call.1} parent=27 // pred_fallthru
          _
        // Predicated region
        $region33: #{tpu_custom_call.1} parent=27 // pred_check
          %p142 = pneg %p60
        $region34: #{tpu_custom_call.1} parent=27 // pred_check_branch
          %144 = sbr.rel (%p142) target = $region36
        $region35: #{tpu_custom_call.1} parent=27 // pred_region
          %145 = dma.done [#allocation8], 256
        $region36: #{tpu_custom_call.1} parent=27 // pred_fallthru
          _
        %p146 = pneg %p39
        %p147 = pneg %p36
        %p148 = pneg %p60
        %p149 = pneg %p57
        %p150 = pneg %p86
        %p151 = pneg %p83
        %s152 = sand.u32 %s73, 1
        %s153 = scalar_lea.sflag [#allocation6], %s152
        %s154 = sand.u32 %s73, 1
        %s155 = smul.addr %s154, 16
        %s156 = scalar_lea.vmem [#allocation9], %s155
        %s157 = smul.u32 %s23, 16
        %s158 = sld [smem:[#allocation3 + %s157]]
        %s159 = scalar_lea.vmem [#allocation4], %s158
        %v160 = vld [vmem:[%s159] sm:$0x1]
        %v161 = vmul.f32 %v160, 11.313708
        %v162 = vld [vmem:[#allocation7] sm:$0x1]
        %v163 = vadd.f32 %v161, %v162
        %164 = vst [vmem:[%s156] sm:$0x1] %v163
        %s165 = sadd.s32 %s157, 1
        %s166 = sld [smem:[#allocation3 + %s165]]
        %s167 = scalar_lea.vmem [#allocation4], %s166
        %v168 = vld [vmem:[%s167] sm:$0x1]
        %v169 = vmul.f32 %v168, 11.313708
        %v170 = vld [vmem:[#allocation7 + $0x1] sm:$0x1]
        %v171 = vadd.f32 %v169, %v170
        %172 = vst [vmem:[%s156 + $0x1] sm:$0x1] %v171
        %s173 = sadd.s32 %s157, 2
        %s174 = sld [smem:[#allocation3 + %s173]]
        %s175 = scalar_lea.vmem [#allocation4], %s174
        %v176 = vld [vmem:[%s175] sm:$0x1]
        %v177 = vmul.f32 %v176, 11.313708
        %v178 = vld [vmem:[#allocation7 + $0x2] sm:$0x1]
        %v179 = vadd.f32 %v177, %v178
        %180 = vst [vmem:[%s156 + $0x2] sm:$0x1] %v179
        %s181 = sadd.s32 %s157, 3
        %s182 = sld [smem:[#allocation3 + %s181]]
        %s183 = scalar_lea.vmem [#allocation4], %s182
        %v184 = vld [vmem:[%s183] sm:$0x1]
        %v185 = vmul.f32 %v184, 11.313708
        %v186 = vld [vmem:[#allocation7 + $0x3] sm:$0x1]
        %v187 = vadd.f32 %v185, %v186
        %188 = vst [vmem:[%s156 + $0x3] sm:$0x1] %v187
        %s189 = sadd.s32 %s157, 4
        %s190 = sld [smem:[#allocation3 + %s189]]
        %s191 = scalar_lea.vmem [#allocation4], %s190
        %v192 = vld [vmem:[%s191] sm:$0x1]
        %v193 = vmul.f32 %v192, 11.313708
        %v194 = vld [vmem:[#allocation7 + $0x4] sm:$0x1]
        %v195 = vadd.f32 %v193, %v194
        %196 = vst [vmem:[%s156 + $0x4] sm:$0x1] %v195
        %s197 = sadd.s32 %s157, 5
        %s198 = sld [smem:[#allocation3 + %s197]]
        %s199 = scalar_lea.vmem [#allocation4], %s198
        %v200 = vld [vmem:[%s199] sm:$0x1]
        %v201 = vmul.f32 %v200, 11.313708
        %v202 = vld [vmem:[#allocation7 + $0x5] sm:$0x1]
        %v203 = vadd.f32 %v201, %v202
        %204 = vst [vmem:[%s156 + $0x5] sm:$0x1] %v203
        %s205 = sadd.s32 %s157, 6
        %s206 = sld [smem:[#allocation3 + %s205]]
        %s207 = scalar_lea.vmem [#allocation4], %s206
        %v208 = vld [vmem:[%s207] sm:$0x1]
        %v209 = vmul.f32 %v208, 11.313708
        %v210 = vld [vmem:[#allocation7 + $0x6] sm:$0x1]
        %v211 = vadd.f32 %v209, %v210
        %212 = vst [vmem:[%s156 + $0x6] sm:$0x1] %v211
        %s213 = sadd.s32 %s157, 7
        %s214 = sld [smem:[#allocation3 + %s213]]
        %s215 = scalar_lea.vmem [#allocation4], %s214
        %v216 = vld [vmem:[%s215] sm:$0x1]
        %v217 = vmul.f32 %v216, 11.313708
        %v218 = vld [vmem:[#allocation7 + $0x7] sm:$0x1]
        %v219 = vadd.f32 %v217, %v218
        %220 = vst [vmem:[%s156 + $0x7] sm:$0x1] %v219
        %s221 = sadd.s32 %s157, 8
        %s222 = sld [smem:[#allocation3 + %s221]]
        %s223 = scalar_lea.vmem [#allocation4], %s222
        %v224 = vld [vmem:[%s223] sm:$0x1]
        %v225 = vmul.f32 %v224, 11.313708
        %v226 = vld [vmem:[#allocation7 + $0x8] sm:$0x1]
        %v227 = vadd.f32 %v225, %v226
        %228 = vst [vmem:[%s156 + $0x8] sm:$0x1] %v227
        %s229 = sadd.s32 %s157, 9
        %s230 = sld [smem:[#allocation3 + %s229]]
        %s231 = scalar_lea.vmem [#allocation4], %s230
        %v232 = vld [vmem:[%s231] sm:$0x1]
        %v233 = vmul.f32 %v232, 11.313708
        %v234 = vld [vmem:[#allocation7 + $0x9] sm:$0x1]
        %v235 = vadd.f32 %v233, %v234
        %236 = vst [vmem:[%s156 + $0x9] sm:$0x1] %v235
        %s237 = sadd.s32 %s157, 10
        %s238 = sld [smem:[#allocation3 + %s237]]
        %s239 = scalar_lea.vmem [#allocation4], %s238
        %v240 = vld [vmem:[%s239] sm:$0x1]
        %v241 = vmul.f32 %v240, 11.313708
        %v242 = vld [vmem:[#allocation7 + $0xa] sm:$0x1]
        %v243 = vadd.f32 %v241, %v242
        %244 = vst [vmem:[%s156 + $0xa] sm:$0x1] %v243
        %s245 = sadd.s32 %s157, 11
        %s246 = sld [smem:[#allocation3 + %s245]]
        %s247 = scalar_lea.vmem [#allocation4], %s246
        %v248 = vld [vmem:[%s247] sm:$0x1]
        %v249 = vmul.f32 %v248, 11.313708
        %v250 = vld [vmem:[#allocation7 + $0xb] sm:$0x1]
        %v251 = vadd.f32 %v249, %v250
        %252 = vst [vmem:[%s156 + $0xb] sm:$0x1] %v251
        %s253 = sadd.s32 %s157, 12
        %s254 = sld [smem:[#allocation3 + %s253]]
        %s255 = scalar_lea.vmem [#allocation4], %s254
        %v256 = vld [vmem:[%s255] sm:$0x1]
        %v257 = vmul.f32 %v256, 11.313708
        %v258 = vld [vmem:[#allocation7 + $0xc] sm:$0x1]
        %v259 = vadd.f32 %v257, %v258
        %260 = vst [vmem:[%s156 + $0xc] sm:$0x1] %v259
        %s261 = sadd.s32 %s157, 13
        %s262 = sld [smem:[#allocation3 + %s261]]
        %s263 = scalar_lea.vmem [#allocation4], %s262
        %v264 = vld [vmem:[%s263] sm:$0x1]
        %v265 = vmul.f32 %v264, 11.313708
        %v266 = vld [vmem:[#allocation7 + $0xd] sm:$0x1]
        %v267 = vadd.f32 %v265, %v266
        %268 = vst [vmem:[%s156 + $0xd] sm:$0x1] %v267
        %s269 = sadd.s32 %s157, 14
        %s270 = sld [smem:[#allocation3 + %s269]]
        %s271 = scalar_lea.vmem [#allocation4], %s270
        %v272 = vld [vmem:[%s271] sm:$0x1]
        %v273 = vmul.f32 %v272, 11.313708
        %v274 = vld [vmem:[#allocation7 + $0xe] sm:$0x1]
        %v275 = vadd.f32 %v273, %v274
        %276 = vst [vmem:[%s156 + $0xe] sm:$0x1] %v275
        %s277 = sadd.s32 %s157, 15
        %s278 = sld [smem:[#allocation3 + %s277]]
        %s279 = scalar_lea.vmem [#allocation4], %s278
        %v280 = vld [vmem:[%s279] sm:$0x1]
        %v281 = vmul.f32 %v280, 11.313708
        %v282 = vld [vmem:[#allocation7 + $0xf] sm:$0x1]
        %v283 = vadd.f32 %v281, %v282
        %284 = vst [vmem:[%s156 + $0xf] sm:$0x1] %v283
        %s285 = sand.u32 %s73, 1
        %s286 = scalar_lea.sflag [#allocation6], %s285
        %s287 = sand.u32 %s73, 1
        %s288 = smul.addr %s287, 16
        %s289 = scalar_lea.vmem [#allocation9], %s288
        // Predicated region
        $region37: #{tpu_custom_call.1} parent=27 // pred_check
          %p290 = pneg %p83
        $region38: #{tpu_custom_call.1} parent=27 // pred_check_branch
          %292 = sbr.rel (%p290) target = $region40
        $region39: #{tpu_custom_call.1} parent=27 // pred_region
          %s294 = ssub.s32 256, 256
          %295 = vsyncadd %s286, %s294
          %s296 = smul.addr %s23, 2
          %s297 = smul.addr %s296, 128
          %s298 = scalar_lea.hbm %s3, %s297
          %s299 = sshll.u32 %s289, 4
          %s300 = int_to_ptr.vmem [resolvable:$true] %s299
          %305 = dma.vmem_to_hbm [thread:$0]  %s300, 256, %s298, %s286, 128, 128, 8
        $region40: #{tpu_custom_call.1} parent=27 // pred_fallthru
          _
      $region28: #{tpu_custom_call.1} parent=5 // pred_fallthru
        _
      %p306 = scmp.le.s32.totalorder 2, %s18
      // Predicated region
      $region41: #{tpu_custom_call.1} parent=5 // pred_check
        %p307 = pneg %p306
      $region42: #{tpu_custom_call.1} parent=5 // pred_check_branch
        %309 = sbr.rel (%p307) target = $region44
      $region43: #{tpu_custom_call.1} parent=5 // pred_region
        %s310 = ssub.s32 %s18, 2
        // Predicated region
        $region45: #{tpu_custom_call.1} parent=43 // pred_check
          %p311 = pneg %p89
        $region46: #{tpu_custom_call.1} parent=43 // pred_check_branch
          %313 = sbr.rel (%p311) target = $region48
        $region47: #{tpu_custom_call.1} parent=43 // pred_region
          %s314 = sand.u32 %s74, 1
          %s315 = scalar_lea.sflag [#allocation6], %s314
          %s316 = sand.u32 %s74, 1
          %s317 = smul.addr %s316, 16
          %s318 = scalar_lea.vmem [#allocation9], %s317
          %319 = dma.done %s315, 256
        $region48: #{tpu_custom_call.1} parent=43 // pred_fallthru
          _
      $region44: #{tpu_custom_call.1} parent=5 // pred_fallthru
        _
    $region6: #{tpu_custom_call.1} parent=1 // loop_footer
      %s22 = sadd.s32 1, %s18
    $region7: #{tpu_custom_call.1} parent=1 // loop_footer_branch
      %17 = sbr.rel target = $region3
    $region8: #{tpu_custom_call.1} parent=1 // loop_exit
      _
    %320 = vsyncpa [#allocation5], 1
    %s321 = scalar_lea.sflag [#allocation5], 1
    %322 = vsyncpa %s321, 1
    %323 = vsyncpa [#allocation8], 1
    %324 = vsyncpa [#allocation6], 1
    %s325 = scalar_lea.sflag [#allocation6], 1
    %326 = vsyncpa %s325, 1

</llo_original>
